<compile_context>
chip_gen: v7x
topology: tpu7x:2x2x1
jax: 0.10.0
libtpu: 0.0.40
codegen_flags: <defaults>
</compile_context>

<pallas_src>
import functools

import jax
import jax.numpy as jnp
from jax import lax
from jax.experimental import pallas as pl
from jax.experimental.pallas import tpu as pltpu

_VMEM_LIMIT = 32 * 1024 * 1024  # safe on v5e/v6e (128 MiB) and v7x (64 MiB)


# ----------------------------------------------------------------------------
# Tiled GEMM (+ optional bias / residual epilogue)
# ----------------------------------------------------------------------------
def _pick_tile(dim, preferred, granule):
    """Largest tile <= preferred that divides dim (full dim if it's small)."""
    if dim <= preferred:
        return dim
    t = preferred - (preferred % granule)
    while t >= granule:
        if dim % t == 0:
            return t
        t -= granule
    for t in range(preferred, 0, -1):
        if dim % t == 0:
            return t
    return dim


def _linear_kernel(*refs, has_bias, has_residual):
    x_ref, w_ref = refs[0], refs[1]
    idx = 2
    b_ref = None
    r_ref = None
    if has_bias:
        b_ref = refs[idx]
        idx += 1
    if has_residual:
        r_ref = refs[idx]
        idx += 1
    o_ref, acc_ref = refs[idx], refs[idx + 1]

    @pl.when(pl.program_id(2) == 0)
    def _():
        acc_ref[...] = jnp.zeros_like(acc_ref)

    acc_ref[...] += jnp.dot(x_ref[...], w_ref[...],
                            preferred_element_type=jnp.float32)

    @pl.when(pl.program_id(2) == pl.num_programs(2) - 1)
    def _():
        out = acc_ref[...]
        if has_bias:
            out = out + b_ref[...]
        if has_residual:
            out = out + r_ref[...]
        o_ref[...] = out.astype(o_ref.dtype)


def linear(x, w_t, bias=None, residual=None, *, tm=256, tn=256, tk=256,
           compute_dtype=jnp.bfloat16):
    """y = x @ w_t (+ bias) (+ residual); tiled, pipelined Pallas GEMM."""
    m, k = x.shape
    k2, n = w_t.shape
    assert k == k2
    tm = _pick_tile(m, tm, 8)
    tn = _pick_tile(n, tn, 128)
    tk = _pick_tile(k, tk, 128)
    grid = (m // tm, n // tn, k // tk)

    has_bias = bias is not None
    has_residual = residual is not None
    itemsize = jnp.dtype(compute_dtype).itemsize

    in_specs = [
        pl.BlockSpec((tm, tk), lambda i, j, kq: (i, kq)),
        pl.BlockSpec((tk, tn), lambda i, j, kq: (kq, j)),
    ]
    args = [x.astype(compute_dtype), w_t.astype(compute_dtype)]
    bytes_accessed = m * k * itemsize + k * n * itemsize + m * n * 4
    if has_bias:
        in_specs.append(pl.BlockSpec((1, tn), lambda i, j, kq: (0, j)))
        args.append(bias.reshape(1, n).astype(jnp.float32))
        bytes_accessed += n * 4
    if has_residual:
        in_specs.append(pl.BlockSpec((tm, tn), lambda i, j, kq: (i, j)))
        args.append(residual.astype(jnp.float32))
        bytes_accessed += m * n * 4

    kernel = functools.partial(_linear_kernel, has_bias=has_bias,
                               has_residual=has_residual)
    return pl.pallas_call(
        kernel,
        out_shape=jax.ShapeDtypeStruct((m, n), jnp.float32),
        grid=grid,
        in_specs=in_specs,
        out_specs=pl.BlockSpec((tm, tn), lambda i, j, kq: (i, j)),
        scratch_shapes=[pltpu.VMEM((tm, tn), jnp.float32)],
        compiler_params=pltpu.CompilerParams(
            dimension_semantics=("parallel", "parallel", "arbitrary"),
            vmem_limit_bytes=_VMEM_LIMIT),
        cost_estimate=pl.CostEstimate(flops=2 * m * n * k, transcendentals=0,
                                      bytes_accessed=bytes_accessed),
    )(*args)


# ----------------------------------------------------------------------------
# Multi-head self-attention: grid over batch, lane-dense (S, 3C) blocks
# ----------------------------------------------------------------------------
def _attn_kernel(qkv_ref, o_ref, *, num_heads, head_dim, scale):
    c = num_heads * head_dim
    qkv = qkv_ref[0]                       # (S, 3C) bf16
    q = qkv[:, 0:c]
    k = qkv[:, c:2 * c]
    v = qkv[:, 2 * c:3 * c]
    outs = []
    for h in range(num_heads):             # unrolled at trace time
        lo, hi = h * head_dim, (h + 1) * head_dim
        qh, kh, vh = q[:, lo:hi], k[:, lo:hi], v[:, lo:hi]
        # contract last dims directly (no explicit K transpose on the XLU)
        s = lax.dot_general(qh, kh, (((1,), (1,)), ((), ())),
                            preferred_element_type=jnp.float32) * scale
        s = s - jnp.max(s, axis=-1, keepdims=True)
        p = jnp.exp(s)
        p = p * pl.reciprocal(jnp.sum(p, axis=-1, keepdims=True), approx=True)
        outs.append(lax.dot_general(p.astype(vh.dtype), vh,
                                    (((1,), (0,)), ((), ())),
                                    preferred_element_type=jnp.float32))
    # single full-width (S, C) store instead of per-head masked stores
    o_ref[0] = jnp.concatenate(outs, axis=-1)


def attention(qkv_bsc, num_heads, scale):
    """qkv_bsc: (B, S, 3C) -> (B, S, C) multi-head softmax attention."""
    b, s, c3 = qkv_bsc.shape
    c = c3 // 3
    dh = c // num_heads
    # TODO(synk): for long sequences this should become a flash-style kernel
    # tiled over the KV axis; at these sizes the full (S, 3C) block fits VMEM.
    kernel = functools.partial(_attn_kernel, num_heads=num_heads,
                               head_dim=dh, scale=scale)
    return pl.pallas_call(
        kernel,
        out_shape=jax.ShapeDtypeStruct((b, s, c), jnp.float32),
        grid=(b,),
        in_specs=[pl.BlockSpec((1, s, c3), lambda i: (i, 0, 0))],
        out_specs=pl.BlockSpec((1, s, c), lambda i: (i, 0, 0)),
        compiler_params=pltpu.CompilerParams(
            dimension_semantics=("parallel",),
            vmem_limit_bytes=_VMEM_LIMIT),
        cost_estimate=pl.CostEstimate(
            flops=4 * b * num_heads * s * s * dh,
            transcendentals=b * num_heads * s * s,
            bytes_accessed=b * s * c3 * 2 + b * s * c * 4),
    )(qkv_bsc.astype(jnp.bfloat16))


# ----------------------------------------------------------------------------
# Parameters (deterministic synthetic init, shapes follow the PyTorch module)
# ----------------------------------------------------------------------------
def init_params(key, c):
    ks = jax.random.split(key, 9)
    scale = 1.0 / jnp.sqrt(jnp.float32(c))

    def w(k, shape):
        return (jax.random.normal(k, shape, jnp.float32) * scale)

    return dict(
        wq=w(ks[0], (c, c)),                 # self.q  (no bias)
        wk=w(ks[1], (c, c)),                 # self.k  (no bias)
        wv=w(ks[2], (c, c)),                 # self.v  (no bias)
        in_proj_w=w(ks[3], (3 * c, c)),      # MHA in_proj_weight
        in_proj_b=(jax.random.normal(ks[4], (3 * c,), jnp.float32) * 0.1),
        out_w=w(ks[5], (c, c)),              # MHA out_proj.weight
        out_b=(jax.random.normal(ks[6], (c,), jnp.float32) * 0.1),
        w1=w(ks[7], (c, c)),                 # fc1 (no bias)
        w2=w(ks[8], (c, c)),                 # fc2 (no bias)
    )


def fuse_params(params):
    """One-time algebraic weight composition (constant-folds under jit)."""
    c = params["wq"].shape[0]
    wiq, wik, wiv = jnp.split(params["in_proj_w"], 3, axis=0)
    w_q_eff = wiq @ params["wq"]             # (C, C): x @ wq.T @ wiq.T
    w_k_eff = wik @ params["wk"]
    w_v_eff = wiv @ params["wv"]
    w_qkv_t = jnp.concatenate([w_q_eff, w_k_eff, w_v_eff], axis=0).T  # (C, 3C)
    w_ffn_t = (params["w2"] @ params["w1"]).T                         # (C, C)
    return dict(w_qkv_t=w_qkv_t, b_qkv=params["in_proj_b"],
                out_w_t=params["out_w"].T, out_b=params["out_b"],
                w_ffn_t=w_ffn_t)


# ----------------------------------------------------------------------------
# Forward pass: 3 tiled GEMM pallas_calls + 1 attention pallas_call
# ----------------------------------------------------------------------------
def transformer_layer(x, params, num_heads):
    s, b, c = x.shape
    dh = c // num_heads
    fused = fuse_params(params)
    xf = x.reshape(s * b, c)

    # fused QKV projection: (S*B, 3C), lane-dense output
    qkv = linear(xf, fused["w_qkv_t"], bias=fused["b_qkv"])
    qkv_bsc = qkv.reshape(s, b, 3 * c).transpose(1, 0, 2)        # (B, S, 3C)

    attn_bsc = attention(qkv_bsc, num_heads, 1.0 / float(dh) ** 0.5)
    attn = attn_bsc.transpose(1, 0, 2).reshape(s * b, c)         # (S*B, C)

    # MHA output projection + residual (original x)
    h = linear(attn, fused["out_w_t"], bias=fused["out_b"], residual=xf)
    # fc2(fc1(h)) + h, composed into a single GEMM (no nonlinearity between)
    out = linear(h, fused["w_ffn_t"], residual=h)
    return out.reshape(s, b, c)


# ----------------------------------------------------------------------------
# Pure-JAX f32 reference (uncomposed, mirrors PyTorch semantics)
# ----------------------------------------------------------------------------
def transformer_layer_ref(x, params, num_heads):
    s, b, c = x.shape
    dh = c // num_heads
    xf = x.reshape(s * b, c)
    q1 = xf @ params["wq"].T
    k1 = xf @ params["wk"].T
    v1 = xf @ params["wv"].T
    wiq, wik, wiv = jnp.split(params["in_proj_w"], 3, axis=0)
    biq, bik, biv = jnp.split(params["in_proj_b"], 3, axis=0)
    q = (q1 @ wiq.T + biq).reshape(s, b, num_heads, dh).transpose(1, 2, 0, 3)
    k = (k1 @ wik.T + bik).reshape(s, b, num_heads, dh).transpose(1, 2, 0, 3)
    v = (v1 @ wiv.T + biv).reshape(s, b, num_heads, dh).transpose(1, 2, 0, 3)
    scores = jnp.einsum("bhsd,bhtd->bhst", q, k) / jnp.sqrt(jnp.float32(dh))
    p = jax.nn.softmax(scores, axis=-1)
    o = jnp.einsum("bhst,bhtd->bhsd", p, v)          # (B, H, S, Dh)
    o = o.transpose(2, 0, 1, 3).reshape(s * b, c)
    h = o @ params["out_w"].T + params["out_b"] + xf
    out = (h @ params["w1"].T) @ params["w2"].T + h
    return out.reshape(s, b, c)


# ----------------------------------------------------------------------------
if __name__ == "__main__":
    S, B, C, H = 8, 2, 32, 4  # seq, batch, channels, heads

    key = jax.random.PRNGKey(0)
    kx, kp = jax.random.split(key)
    x = jax.random.normal(kx, (S, B, C), jnp.float32)
    params = init_params(kp, C)

    out = transformer_layer(x, params, H)
    out = jax.block_until_ready(out)

    ref = transformer_layer_ref(x, params, H)
    assert out.shape == (S, B, C)
    # bf16 matmul inputs (f32 accumulation / softmax) -> bounded relative error
    rel = float(jnp.linalg.norm(out - ref) / jnp.linalg.norm(ref))
    assert rel < 3e-2, f"mismatch vs reference: rel_l2={rel}"

    print("KERNEL_OK")
</pallas_src>

<mosaic_0001>
module attributes {stable_mosaic.version = 11 : i64} {
  func.func @_linear_kernel(%arg0: i32, %arg1: i32, %arg2: i32, %arg3: memref<16x32xbf16, #tpu.memory_space<vmem>>, %arg4: memref<32x96xbf16, #tpu.memory_space<vmem>>, %arg5: memref<1x96xf32, #tpu.memory_space<vmem>>, %arg6: memref<16x96xf32, #tpu.memory_space<vmem>>, %arg7: memref<16x96xf32, #tpu.memory_space<vmem>>) attributes {dimension_semantics = [#tpu.dimension_semantics<parallel>, #tpu.dimension_semantics<parallel>, #tpu.dimension_semantics<arbitrary>], iteration_bounds = array<i64: 1, 1, 1>, scalar_prefetch = 0 : i64, scratch_operands = 1 : i64, tpu.core_type = #tpu.core_type<tc>, window_params = [{transform_indices = @transform_0, window_bounds = array<i64: 16, 32>}, {transform_indices = @transform_1, window_bounds = array<i64: 32, 96>}, {transform_indices = @transform_2, window_bounds = array<i64: 1, 96>}, {transform_indices = @transform_3, window_bounds = array<i64: 16, 96>}]} {
    %c0_i32 = arith.constant 0 : i32
    %0 = arith.cmpi eq, %arg2, %c0_i32 : i32
    %1 = arith.extui %0 : i1 to i32
    %c0_i32_0 = arith.constant 0 : i32
    %2 = arith.cmpi ne, %1, %c0_i32_0 : i32
    scf.if %2 {
      %cst_10 = arith.constant 0.000000e+00 : f32
      %12 = vector.broadcast %cst_10 : f32 to vector<16x96xf32>
      %c0_11 = arith.constant 0 : index
      %c0_12 = arith.constant 0 : index
      %13 = vector.load %arg7[%c0_11, %c0_12] : memref<16x96xf32, #tpu.memory_space<vmem>>, vector<16x96xf32>
      tpu.vector_store %arg7[%c0_11, %c0_12], %12 {strides = array<i32>} : memref<16x96xf32, #tpu.memory_space<vmem>>, vector<16x96xf32>,
    } else {
    }
    %c0 = arith.constant 0 : index
    %c0_1 = arith.constant 0 : index
    %3 = vector.load %arg7[%c0, %c0_1] : memref<16x96xf32, #tpu.memory_space<vmem>>, vector<16x96xf32>
    %c0_2 = arith.constant 0 : index
    %c0_3 = arith.constant 0 : index
    %4 = vector.load %arg3[%c0_2, %c0_3] : memref<16x32xbf16, #tpu.memory_space<vmem>>, vector<16x32xbf16>
    %c0_4 = arith.constant 0 : index
    %c0_5 = arith.constant 0 : index
    %5 = vector.load %arg4[%c0_4, %c0_5] : memref<32x96xbf16, #tpu.memory_space<vmem>>, vector<32x96xbf16>
    %cst = arith.constant dense<0.000000e+00> : vector<16x96xf32>
    %6 = tpu.matmul %4, %5, %cst {dimension_numbers = #tpu.dot_dimension_numbers<[1], [0], [0], [1], [0, 0, 1, 1], [], []>} : vector<16x32xbf16>, vector<32x96xbf16>, vector<16x96xf32> -> vector<16x96xf32>
    %7 = arith.addf %3, %6 : vector<16x96xf32>
    %c0_6 = arith.constant 0 : index
    %c0_7 = arith.constant 0 : index
    %8 = vector.load %arg7[%c0_6, %c0_7] : memref<16x96xf32, #tpu.memory_space<vmem>>, vector<16x96xf32>
    tpu.vector_store %arg7[%c0_6, %c0_7], %7 {strides = array<i32>} : memref<16x96xf32, #tpu.memory_space<vmem>>, vector<16x96xf32>,
    %c0_i32_8 = arith.constant 0 : i32
    %9 = arith.cmpi eq, %arg2, %c0_i32_8 : i32
    %10 = arith.extui %9 : i1 to i32
    %c0_i32_9 = arith.constant 0 : i32
    %11 = arith.cmpi ne, %10, %c0_i32_9 : i32
    scf.if %11 {
      %c0_10 = arith.constant 0 : index
      %c0_11 = arith.constant 0 : index
      %12 = vector.load %arg7[%c0_10, %c0_11] : memref<16x96xf32, #tpu.memory_space<vmem>>, vector<16x96xf32>
      %c0_12 = arith.constant 0 : index
      %c0_13 = arith.constant 0 : index
      %13 = vector.load %arg5[%c0_12, %c0_13] : memref<1x96xf32, #tpu.memory_space<vmem>>, vector<1x96xf32>
      %14 = vector.broadcast %13 : vector<1x96xf32> to vector<16x96xf32>
      %15 = arith.addf %12, %14 : vector<16x96xf32>
      %c0_14 = arith.constant 0 : index
      %c0_15 = arith.constant 0 : index
      %16 = vector.load %arg6[%c0_14, %c0_15] : memref<16x96xf32, #tpu.memory_space<vmem>>, vector<16x96xf32>
      tpu.vector_store %arg6[%c0_14, %c0_15], %15 {strides = array<i32>} : memref<16x96xf32, #tpu.memory_space<vmem>>, vector<16x96xf32>,
    } else {
    }
    return
  }
  func.func @transform_0(%arg0: i32, %arg1: i32, %arg2: i32) -> (i32, i32) {
    %c0_i32 = arith.constant 0 : i32
    return %arg0, %arg2 : i32, i32
  }
  func.func @transform_1(%arg0: i32, %arg1: i32, %arg2: i32) -> (i32, i32) {
    %c0_i32 = arith.constant 0 : i32
    return %arg2, %arg1 : i32, i32
  }
  func.func @transform_2(%arg0: i32, %arg1: i32, %arg2: i32) -> (i32, i32) {
    %c0_i32 = arith.constant 0 : i32
    %c0_i32_0 = arith.constant 0 : i32
    return %c0_i32, %arg1 : i32, i32
  }
  func.func @transform_3(%arg0: i32, %arg1: i32, %arg2: i32) -> (i32, i32) {
    %c0_i32 = arith.constant 0 : i32
    return %arg0, %arg1 : i32, i32
  }
}

</mosaic_0001>

<llo_original>
// kernel: tpu_custom_call.1
$region0: #{tpu_custom_call.1}
  #allocation0 [shape = 'u32[]', space=smem, size = 0x4, offset = 0x4, fixed_abs, tag = 'smem constant byte address 0x4 - core index']
  #allocation1 [shape = 'u32[144,128]{1,0:T(1,128)}', space=vmem, size = 0x12000, scoped, tag = 'internal scratch']
  #allocation2 [shape = 'f32[16,96]{1,0:T(8,128)}', space=vmem, size = 0x2000, scoped, tag = 'scratch operand']
  %s0 = inlined_call_operand.hbm [shape: bf16[16,32], index: 0, kind: input, shape index: {}]
  %s1 = inlined_call_operand.hbm [shape: bf16[32,96], index: 1, kind: input, shape index: {}]
  %s2 = inlined_call_operand.vmem [shape: f32[1,96], index: 2, kind: input, shape index: {}]
  %s3 = inlined_call_operand.hbm [shape: f32[16,96], index: 3, kind: output, shape index: {}]
  %s4 = sld [smem:[#allocation0]]
  $region38: #{tpu_custom_call.1} parent=0
    _
  %s6 = ssub.s32 1, %s4
  %s7 = scalar_select 0, %s6, %s4
  $region1: #{tpu_custom_call.1} parent=0
    #allocation3 [shape = 'u8[4096]{0}', space=vmem, size = 0x1000, scoped, tag = 'input window, operand 0, single buffered']
    #allocation4 [shape = 's32[1]{0}', space=sflag, size = 0x4, scoped, tag = 'scoped memory for tpu_custom_call.1']
    #allocation5 [shape = 's32[1]{0}', space=sflag, size = 0x4, scoped, tag = 'scoped memory for tpu_custom_call.1']
    #allocation6 [shape = 'u8[8192]{0}', space=vmem, size = 0x2000, scoped, tag = 'input window, operand 1, single buffered']
    #allocation7 [shape = 's32[1]{0}', space=sflag, size = 0x4, scoped, tag = 'scoped memory for tpu_custom_call.1']
    #allocation8 [shape = 'u8[8192]{0}', space=vmem, size = 0x2000, scoped, tag = 'output window, operand 0, single buffered']
    %8 = vsyncpa [#allocation4], 0
    %9 = vsyncpa [#allocation7], 0
    %10 = vsyncpa [#allocation5], 0
    // Predicated region
    $region2: #{tpu_custom_call.1} parent=1 // pred_check
      _
    $region3: #{tpu_custom_call.1} parent=1 // pred_check_branch
      %12 = sbr.rel (0) target = $region5
    $region4: #{tpu_custom_call.1} parent=1 // pred_region
      %s14 = ssub.s32 128, 128
      %15 = vsyncadd [#allocation4], %s14
      %s16 = sshll.u32 [#allocation3], 4
      %s17 = int_to_ptr.vmem [resolvable:$true] %s16
      %22 = dma.hbm_to_vmem [thread:$0]  %s0, 128, %s17, [#allocation4], 64, 64, 4
    $region5: #{tpu_custom_call.1} parent=1 // pred_fallthru
      _
    // Predicated region
    $region6: #{tpu_custom_call.1} parent=1 // pred_check
      _
    $region7: #{tpu_custom_call.1} parent=1 // pred_check_branch
      %24 = sbr.rel (0) target = $region9
    $region8: #{tpu_custom_call.1} parent=1 // pred_region
      %s26 = ssub.s32 256, 256
      %27 = vsyncadd [#allocation7], %s26
      %s28 = sshll.u32 [#allocation6], 4
      %s29 = int_to_ptr.vmem [resolvable:$true] %s28
      %34 = dma.hbm_to_vmem [thread:$0]  %s1, 256, %s29, [#allocation7], 64, 64, 4
    $region9: #{tpu_custom_call.1} parent=1 // pred_fallthru
      _
    // Predicated region
    $region10: #{tpu_custom_call.1} parent=1 // pred_check
      _
    $region11: #{tpu_custom_call.1} parent=1 // pred_check_branch
      %36 = sbr.rel (0) target = $region13
    $region12: #{tpu_custom_call.1} parent=1 // pred_region
      _
    $region13: #{tpu_custom_call.1} parent=1 // pred_fallthru
      _
    // Predicated region
    $region14: #{tpu_custom_call.1} parent=1 // pred_check
      _
    $region15: #{tpu_custom_call.1} parent=1 // pred_check_branch
      %38 = sbr.rel (0) target = $region17
    $region16: #{tpu_custom_call.1} parent=1 // pred_region
      %39 = dma.done [#allocation4], 128
    $region17: #{tpu_custom_call.1} parent=1 // pred_fallthru
      _
    // Predicated region
    $region18: #{tpu_custom_call.1} parent=1 // pred_check
      _
    $region19: #{tpu_custom_call.1} parent=1 // pred_check_branch
      %41 = sbr.rel (0) target = $region21
    $region20: #{tpu_custom_call.1} parent=1 // pred_region
      %42 = dma.done [#allocation7], 256
    $region21: #{tpu_custom_call.1} parent=1 // pred_fallthru
      _
    %p44 = scmp.eq.s32.totalorder 0, 0
    // Predicated region
    $region22: #{tpu_custom_call.1} parent=1 // pred_check
      %p45 = pneg %p44
    $region23: #{tpu_custom_call.1} parent=1 // pred_check_branch
      %47 = sbr.rel (%p45) target = $region25
    $region24: #{tpu_custom_call.1} parent=1 // pred_region
      %vm48 = vcmask 785408
      %49 = vst.msk [vmem:[#allocation2] sm:$0xff] %vm48, 0.0
      %50 = vst.msk [vmem:[#allocation2 + $0x8] sm:$0xff] %vm48, 0.0
    $region25: #{tpu_custom_call.1} parent=1 // pred_fallthru
      _
    %v51 = vld [vmem:[#allocation2] sm:$0xff]
    %v52 = vld [vmem:[#allocation2 + $0x8] sm:$0xff]
    %v53 = vld [vmem:[#allocation3] sm:$0xf]
    %v54 = vld [vmem:[#allocation3 + $0x4] sm:$0xf]
    %v55 = vld [vmem:[#allocation6] sm:$0xf]
    %v56 = vld [vmem:[#allocation6 + $0x4] sm:$0xf]
    %v57 = vld [vmem:[#allocation6 + $0x8] sm:$0xf]
    %v58 = vld [vmem:[#allocation6 + $0xc] sm:$0xf]
    %v61 = vunpack.c.l.b16 %v53
    %v62 = vunpack.c.l.b16 %v54
    %v63 = vpack.c.b16 %v62, %v61
    %v68 = vunpack.c.l.b16 %v55
    %v69 = vunpack.c.l.b16 %v56
    %v70 = vunpack.c.l.b16 %v57
    %v71 = vunpack.c.l.b16 %v58
    %v72 = vpack.c.b16 %v69, %v68
    %v73 = vpack.c.b16 %v71, %v70
    %vm76 = vcmask 261120
    %v78 = vsel %vm76, %v63, 0
    %80 = vmatprep.subr.bf16.mxu0 0
    %81 = vmatpush1.bf16.msra.mxu0 %v72
    %82 = vmatprep.subr.bf16.mxu0 0
    %83 = vmatpush1.bf16.msra.mxu0 %v73
    %84 = vmatprep.subr.bf16.mxu0 0
    %85 = vmatpush1.bf16.msra.mxu0 0
    %86 = vmatprep.subr.bf16.mxu0 0
    %87 = vmatpush1.bf16.msra.mxu0 0
    %88 = vmatprep.subr.bf16.mxu0 0
    %89 = vmatpush1.bf16.msra.mxu0 0
    %90 = vmatprep.subr.bf16.mxu0 0
    %91 = vmatpush1.bf16.msra.mxu0 0
    %92 = vmatprep.subr.bf16.mxu0 0
    %93 = vmatpush1.bf16.msra.mxu0 0
    %94 = vmatprep.subr.bf16.mxu0 0
    %95 = vmatpush1.bf16.msra.mxu0 0
    %96 = vmatprep.subr.bf16.mxu0 0
    %97 = vmatpush1.bf16.msra.mxu0 0
    %98 = vmatprep.subr.bf16.mxu0 0
    %99 = vmatpush1.bf16.msra.mxu0 0
    %100 = vmatprep.subr.bf16.mxu0 0
    %101 = vmatpush1.bf16.msra.mxu0 0
    %102 = vmatprep.subr.bf16.mxu0 0
    %103 = vmatpush1.bf16.msra.mxu0 0
    %104 = vmatprep.subr.bf16.mxu0 0
    %105 = vmatpush1.bf16.msra.mxu0 0
    %106 = vmatprep.subr.bf16.mxu0 0
    %107 = vmatpush1.bf16.msra.mxu0 0
    %108 = vmatprep.subr.bf16.mxu0 0
    %109 = vmatpush1.bf16.msra.mxu0 0
    %110 = vmatprep.subr.bf16.mxu0 0
    %111 = vmatpush1.bf16.msra.mxu0 0
    %112 = vmatprep.mubr.bf16.mxu0 0
    %113 = vmatmul.mubr.bf16.gmra.mrb[0].mxu0 %v78
    %v114 = vpop.f32.mrb[0].mxu0
    %v115 = vadd.f32 0.0, %v114
    %v116 = vpop.f32.mrb[0].mxu0
    %v117 = vpop.f32.mrb[0].mxu0
    %v118 = vadd.f32 0.0, %v117
    %v119 = vpop.f32.mrb[0].mxu0
    %120 = vdwg.mxu0
    %v121 = vadd.f32 %v51, %v115
    %v122 = vadd.f32 %v52, %v118
    %vm123 = vcmask 785408
    %124 = vst.msk [vmem:[#allocation2] sm:$0xff] %vm123, %v121
    %125 = vst.msk [vmem:[#allocation2 + $0x8] sm:$0xff] %vm123, %v122
    // Predicated region
    $region26: #{tpu_custom_call.1} parent=1 // pred_check
      %p126 = pneg %p44
    $region27: #{tpu_custom_call.1} parent=1 // pred_check_branch
      %128 = sbr.rel (%p126) target = $region29
    $region28: #{tpu_custom_call.1} parent=1 // pred_region
      %v129 = vld [vmem:[#allocation2] sm:$0xff]
      %v130 = vld [vmem:[#allocation2 + $0x8] sm:$0xff]
      %v131 = vld [vmem:[%s2] sm:$0x1]
      %v133 = vlaneseq
      %v134 = vshrl.u32 %v133, 7
      %v135 = vsub.s32 0, %v134
      %v136 = vrot.slane %v131, %v135
      %v138 = vadd.f32 %v129, %v136
      %v139 = vadd.f32 %v130, %v136
      %140 = vst.msk [vmem:[#allocation8] sm:$0xff] %vm123, %v138
      %141 = vst.msk [vmem:[#allocation8 + $0x8] sm:$0xff] %vm123, %v139
    $region29: #{tpu_custom_call.1} parent=1 // pred_fallthru
      _
    // Predicated region
    $region30: #{tpu_custom_call.1} parent=1 // pred_check
      _
    $region31: #{tpu_custom_call.1} parent=1 // pred_check_branch
      %143 = sbr.rel (0) target = $region33
    $region32: #{tpu_custom_call.1} parent=1 // pred_region
      %s145 = ssub.s32 256, 256
      %146 = vsyncadd [#allocation5], %s145
      %s147 = sshll.u32 [#allocation8], 4
      %s148 = int_to_ptr.vmem [resolvable:$true] %s147
      %153 = dma.vmem_to_hbm [thread:$0]  %s148, 256, %s3, [#allocation5], 128, 128, 8
    $region33: #{tpu_custom_call.1} parent=1 // pred_fallthru
      _
    // Predicated region
    $region34: #{tpu_custom_call.1} parent=1 // pred_check
      _
    $region35: #{tpu_custom_call.1} parent=1 // pred_check_branch
      %155 = sbr.rel (0) target = $region37
    $region36: #{tpu_custom_call.1} parent=1 // pred_region
      %156 = dma.done [#allocation5], 256
    $region37: #{tpu_custom_call.1} parent=1 // pred_fallthru
      _
    %157 = vsyncpa [#allocation4], 1
    %158 = vsyncpa [#allocation7], 1
    %159 = vsyncpa [#allocation5], 1

</llo_original>
